<compile_context>
chip_gen: v6e
topology: v6e:2x2x1
jax: 0.10.0
libtpu: 0.0.40
codegen_flags: <defaults>
</compile_context>

<pallas_src>
import jax
import jax.numpy as jnp
from jax.experimental import pallas as pl
from jax.experimental.pallas import tpu as pltpu


# ----------------------------------------------------------------------------- kernels
def _linear_prob_hw_tiled_kernel(x_ref, w_ref, b_ref, o_ref):
    # x_ref: (1, C, T)   activations for one batch element / HW tile
    # w_ref: (N, C)      VMEM-resident weight
    # b_ref: (N, 1)      VMEM-resident bias (broadcast over lanes)
    # o_ref: (1, N, T)   output tile (lane-dense last dim)
    acc = jnp.dot(w_ref[...], x_ref[0], preferred_element_type=jnp.float32)  # (N, T)
    o_ref[0] = (acc + b_ref[...]).astype(o_ref.dtype)


def _linear_prob_batch_blocked_kernel(x_ref, w_ref, b_ref, o_ref):
    # x_ref: (bt, C, HW), w_ref: (N, C), b_ref: (N, 1), o_ref: (bt, N, HW)
    bt = x_ref.shape[0]
    # Broadcast the tiny weight to a true batched matmul (batch dim on both
    # operands -> no in-kernel transpose; same form as the flash-attn einsum).
    w_b = jnp.broadcast_to(w_ref[...], (bt,) + w_ref.shape)                  # (bt, N, C)
    acc = jnp.einsum("bnc,bct->bnt", w_b, x_ref[...],
                     preferred_element_type=jnp.float32)                     # (bt, N, HW)
    o_ref[...] = (acc + b_ref[...]).astype(o_ref.dtype)


# ----------------------------------------------------------------------------- helpers
def _tpu_vmem_capacity_bytes():
    """Physical VMEM of the attached chip; conservative (v7x-sized) fallback."""
    try:
        cap = int(pltpu.get_tpu_info().vmem_capacity_bytes)
        if cap > 0:
            return cap
    except Exception:  # pragma: no cover - non-TPU / API drift
        pass
    return 64 * 1024 * 1024


def _choose_hw_tile(hw, c, n, vmem_budget_bytes, itemsize):
    """Pick the HW (lane) tile size for the HW-tiled mode.

    Prefers a 128-multiple that divides HW exactly (no masked remainder), but
    never lets that preference collapse the tile: if the best exact divisor is
    smaller than ~max_tile/2 we use max_tile and accept one masked remainder
    block (Pallas handles partial Blocked tiles correctly).
    """
    bytes_per_lane = (c + n) * itemsize
    max_tile = max(128, vmem_budget_bytes // bytes_per_lane)
    max_tile = (max_tile // 128) * 128
    if hw <= max_tile:
        return hw  # full-extent block (always legal, even if not 128-aligned)
    best = 0
    t = 128
    while t <= max_tile:
        if hw % t == 0:
            best = t
        t += 128
    if best >= max_tile // 2:
        return best
    return max_tile


# ----------------------------------------------------------------------------- wrapper
def linear_prob_forward(x_nchw, weight, bias, *, vmem_budget_bytes=None):
    """LinearProb.forward: 1x1 conv over NCHW input.

    x_nchw : (B, dim, H, W)
    weight : (n_classes, dim)   -- squeezed Conv2d (n_classes, dim, 1, 1) weight
    bias   : (n_classes,)
    returns: (B, n_classes, H, W)
    """
    # torch.clone(x.detach()) -> values unchanged; stop_gradient mirrors detach.
    x_nchw = jax.lax.stop_gradient(x_nchw)

    B, C, H, W = x_nchw.shape
    N = weight.shape[0]
    HW = H * W
    dtype = x_nchw.dtype
    itemsize = jnp.dtype(dtype).itemsize
    w_itemsize = jnp.dtype(weight.dtype).itemsize

    cap = _tpu_vmem_capacity_bytes()
    if vmem_budget_bytes is None:
        # Per-grid-step (single-buffer) activation+output budget.  Double-buffered
        # live set ~2x this; stays well inside v5e/v6e (128 MiB) and v7x (64 MiB)
        # physical VMEM.
        vmem_budget_bytes = max(2 * 1024 * 1024, min(12 * 1024 * 1024, cap // 5))

    x_flat = x_nchw.reshape(B, C, HW)   # free reshape, no transpose
    w = weight                          # (N, C) used directly
    b = bias.reshape(N, 1)              # broadcast over the lane (HW) axis

    bytes_per_lane = (C + N) * itemsize
    per_image_bytes = HW * bytes_per_lane

    if per_image_bytes <= vmem_budget_bytes:
        # ---- small-HW mode: block over the batch axis -------------------------
        bt = max(1, min(B, vmem_budget_bytes // per_image_bytes))
        if B >= 2:
            # Keep >= 2 grid steps so the parallel axis can shard across both
            # TensorCores on v7x (neutral on single-TC v5e/v6e).
            bt = min(bt, -(-B // 2))
        grid = (pl.cdiv(B, bt),)
        in_specs = [
            pl.BlockSpec((bt, C, HW), lambda bi: (bi, 0, 0)),
            pl.BlockSpec((N, C), lambda bi: (0, 0)),      # resident weight
            pl.BlockSpec((N, 1), lambda bi: (0, 0)),      # resident bias
        ]
        out_specs = pl.BlockSpec((bt, N, HW), lambda bi: (bi, 0, 0))
        kernel = _linear_prob_batch_blocked_kernel
        dim_sem = ("parallel",)
        step_io_bytes = bt * per_image_bytes
    else:
        # ---- large-HW mode: tile the HW (lane) axis ---------------------------
        tile_hw = _choose_hw_tile(HW, C, N, vmem_budget_bytes, itemsize)
        n_hw_tiles = pl.cdiv(HW, tile_hw)
        # v7x: try to keep the total block count even so both TCs get equal work
        # (only if it costs nothing: never increases the per-step VMEM footprint).
        if n_hw_tiles > 1 and (B * n_hw_tiles) % 2 == 1:
            t2 = -(-HW // (n_hw_tiles + 1))
            t2 = -(-t2 // 128) * 128
            if t2 >= 128 and pl.cdiv(HW, t2) % 2 == 0:
                tile_hw = t2
                n_hw_tiles = pl.cdiv(HW, tile_hw)
        grid = (B, n_hw_tiles)
        in_specs = [
            pl.BlockSpec((1, C, tile_hw), lambda bi, ti: (bi, 0, ti)),
            pl.BlockSpec((N, C), lambda bi, ti: (0, 0)),  # resident weight
            pl.BlockSpec((N, 1), lambda bi, ti: (0, 0)),  # resident bias
        ]
        out_specs = pl.BlockSpec((1, N, tile_hw), lambda bi, ti: (bi, 0, ti))
        kernel = _linear_prob_hw_tiled_kernel
        dim_sem = ("parallel", "parallel")
        step_io_bytes = tile_hw * bytes_per_lane

    # Generation-aware VMEM limit: double-buffered step I/O + resident params +
    # headroom for internal scratch, clamped under the chip's physical VMEM.
    resident_bytes = (N * C + N) * w_itemsize
    needed = 2 * step_io_bytes + 2 * resident_bytes + 8 * 1024 * 1024
    vmem_limit = int(min(int(cap * 0.9), max(32 * 1024 * 1024, needed)))

    cost = pl.CostEstimate(
        flops=2 * B * N * C * HW,
        transcendentals=0,
        bytes_accessed=itemsize * (B * C * HW + B * N * HW) + w_itemsize * (N * C + N),
    )

    out_flat = pl.pallas_call(
        kernel,
        out_shape=jax.ShapeDtypeStruct((B, N, HW), dtype),
        grid_spec=pltpu.PrefetchScalarGridSpec(
            num_scalar_prefetch=0,
            grid=grid,
            in_specs=in_specs,
            out_specs=out_specs,
        ),
        compiler_params=pltpu.CompilerParams(
            dimension_semantics=dim_sem,
            vmem_limit_bytes=vmem_limit,
        ),
        cost_estimate=cost,
    )(x_flat, w, b)

    return out_flat.reshape(B, N, H, W)  # free reshape back to NCHW


# ----------------------------------------------------------------------------- tests
if __name__ == "__main__":
    key = jax.random.PRNGKey(0)

    def _ref(x, w, b):
        return jnp.einsum("bchw,nc->bnhw", x, w) + b[None, :, None, None]

    def _make(key, B, dim, H, W, n_classes):
        kx, kw, kb = jax.random.split(key, 3)
        x = jax.random.normal(kx, (B, dim, H, W), dtype=jnp.float32)
        w = jax.random.normal(kw, (n_classes, dim), dtype=jnp.float32) * 0.02
        b = jax.random.normal(kb, (n_classes,), dtype=jnp.float32) * 0.02
        return x, w, b

    # Test 1: module-consistent demo shape (dim=32, n_classes=10, 8x8 map).
    # Exercises the batch-blocked path (small HW).
    k1, k2, k3, key = jax.random.split(key, 4)
    x, w, b = _make(k1, 2, 32, 8, 8, 10)
    out = jax.block_until_ready(linear_prob_forward(x, w, b))
    assert out.shape == (2, 10, 8, 8)
    assert jnp.allclose(out, _ref(x, w, b), atol=1e-4, rtol=1e-4)

    # Test 2: HW-tiled path with a ragged (masked) final block.
    # HW = 16*20 = 320; a forced small budget gives tile_hw=128 -> blocks 128/128/64.
    dim, n_classes = 8, 10
    x, w, b = _make(k2, 1, dim, 16, 20, n_classes)
    out = jax.block_until_ready(
        linear_prob_forward(x, w, b,
                            vmem_budget_bytes=(dim + n_classes) * 4 * 128))
    assert out.shape == (1, n_classes, 16, 20)
    assert jnp.allclose(out, _ref(x, w, b), atol=1e-4, rtol=1e-4)

    # Test 3: batch-blocked path with a partial final batch block (B=5 -> bt=3, 2 steps).
    x, w, b = _make(k3, 5, 16, 4, 4, 6)
    out = jax.block_until_ready(linear_prob_forward(x, w, b))
    assert out.shape == (5, 6, 4, 4)
    assert jnp.allclose(out, _ref(x, w, b), atol=1e-4, rtol=1e-4)

    print("KERNEL_OK")
</pallas_src>

<mosaic_0001>
module attributes {stable_mosaic.version = 11 : i64} {
  func.func @_linear_prob_batch_blocked_kernel(%arg0: i32, %arg1: memref<1x32x64xf32, #tpu.memory_space<vmem>>, %arg2: memref<10x32xf32, #tpu.memory_space<vmem>>, %arg3: memref<10x1xf32, #tpu.memory_space<vmem>>, %arg4: memref<1x10x64xf32, #tpu.memory_space<vmem>>) attributes {dimension_semantics = [#tpu.dimension_semantics<parallel>], iteration_bounds = array<i64: 2>, scalar_prefetch = 0 : i64, scratch_operands = 0 : i64, tpu.core_type = #tpu.core_type<tc>, window_params = [{transform_indices = @transform_0, window_bounds = array<i64: 1, 32, 64>}, {pipeline_mode = #tpu.pipeline_mode<synchronous>, transform_indices = @transform_1, window_bounds = array<i64: 10, 32>}, {pipeline_mode = #tpu.pipeline_mode<synchronous>, transform_indices = @transform_2, window_bounds = array<i64: 10, 1>}, {transform_indices = @transform_3, window_bounds = array<i64: 1, 10, 64>}]} {
    %c0 = arith.constant 0 : index
    %c0_0 = arith.constant 0 : index
    %0 = vector.load %arg2[%c0, %c0_0] : memref<10x32xf32, #tpu.memory_space<vmem>>, vector<10x32xf32>
    %1 = vector.shape_cast %0 : vector<10x32xf32> to vector<1x10x32xf32>
    %c0_1 = arith.constant 0 : index
    %c0_2 = arith.constant 0 : index
    %c0_3 = arith.constant 0 : index
    %2 = vector.load %arg1[%c0_1, %c0_2, %c0_3] : memref<1x32x64xf32, #tpu.memory_space<vmem>>, vector<1x32x64xf32>
    "tpu.trace_start"() <{level = 10 : i32, message = "bnc,bct->bnt"}> : () -> ()
    %cst = arith.constant dense<0.000000e+00> : vector<1x10x64xf32>
    %3 = tpu.matmul %1, %2, %cst {dimension_numbers = #tpu.dot_dimension_numbers<[2], [1], [1], [2], [0, 0, 0, 1, 1, 2], [0], [0]>} : vector<1x10x32xf32>, vector<1x32x64xf32>, vector<1x10x64xf32> -> vector<1x10x64xf32>
    "tpu.trace_stop"() : () -> ()
    %c0_4 = arith.constant 0 : index
    %c0_5 = arith.constant 0 : index
    %4 = vector.load %arg3[%c0_4, %c0_5] : memref<10x1xf32, #tpu.memory_space<vmem>>, vector<10x1xf32>
    %5 = vector.shape_cast %4 : vector<10x1xf32> to vector<1x10x1xf32>
    %6 = vector.broadcast %5 : vector<1x10x1xf32> to vector<1x10x64xf32>
    %7 = arith.addf %3, %6 : vector<1x10x64xf32>
    %c0_6 = arith.constant 0 : index
    %c0_7 = arith.constant 0 : index
    %c0_8 = arith.constant 0 : index
    %8 = vector.load %arg4[%c0_6, %c0_7, %c0_8] : memref<1x10x64xf32, #tpu.memory_space<vmem>>, vector<1x10x64xf32>
    tpu.vector_store %arg4[%c0_6, %c0_7, %c0_8], %7 {strides = array<i32>} : memref<1x10x64xf32, #tpu.memory_space<vmem>>, vector<1x10x64xf32>,
    return
  }
  func.func @transform_0(%arg0: i32) -> (i32, i32, i32) {
    %c0_i32 = arith.constant 0 : i32
    %c0_i32_0 = arith.constant 0 : i32
    %c0_i32_1 = arith.constant 0 : i32
    return %arg0, %c0_i32, %c0_i32_0 : i32, i32, i32
  }
  func.func @transform_1(%arg0: i32) -> (i32, i32) {
    %c0_i32 = arith.constant 0 : i32
    %c0_i32_0 = arith.constant 0 : i32
    %c0_i32_1 = arith.constant 0 : i32
    return %c0_i32, %c0_i32_0 : i32, i32
  }
  func.func @transform_2(%arg0: i32) -> (i32, i32) {
    %c0_i32 = arith.constant 0 : i32
    %c0_i32_0 = arith.constant 0 : i32
    %c0_i32_1 = arith.constant 0 : i32
    return %c0_i32, %c0_i32_0 : i32, i32
  }
  func.func @transform_3(%arg0: i32) -> (i32, i32, i32) {
    %c0_i32 = arith.constant 0 : i32
    %c0_i32_0 = arith.constant 0 : i32
    %c0_i32_1 = arith.constant 0 : i32
    return %arg0, %c0_i32, %c0_i32_0 : i32, i32, i32
  }
}

</mosaic_0001>

<llo_original>
// kernel: tpu_custom_call.1
$region0: #{tpu_custom_call.1}
  #allocation0 [shape = 'u32[]', space=smem, size = 0x4, offset = 0x4, fixed_abs, tag = 'smem constant byte address 0x4 - core index']
  #allocation1 [shape = 'u32[144,128]{1,0:T(1,128)}', space=vmem, size = 0x12000, scoped, tag = 'internal scratch']
  %s0 = inlined_call_operand.hbm [shape: f32[2,32,64], index: 0, kind: input, shape index: {}]
  %s1 = inlined_call_operand.vmem [shape: f32[10,32], index: 1, kind: input, shape index: {}]
  %s2 = inlined_call_operand.vmem [shape: f32[10,1], index: 2, kind: input, shape index: {}]
  %s3 = inlined_call_operand.vmem [shape: f32[2,10,64], index: 3, kind: output, shape index: {}]
  %s4 = sld [smem:[#allocation0]]
  $region49: #{tpu_custom_call.1} parent=0
    _
  %s6 = ssub.s32 1, %s4
  %s7 = scalar_select 0, %s6, %s4
  $region1: #{tpu_custom_call.1} parent=0
    #allocation2 [shape = 'u8[32768]{0}', space=vmem, size = 0x8000, scoped, tag = 'input window, operand 0']
    #allocation3 [shape = 's32[2]{0}', space=sflag, size = 0x8, scoped, tag = 'scoped memory for tpu_custom_call.1']
    %8 = vsyncpa [#allocation3], 0
    %s9 = scalar_lea.sflag [#allocation3], 1
    %10 = vsyncpa %s9, 0
    loop: start=0, step=1, limit=4
    $region2: #{tpu_custom_call.1} parent=1 // loop_pre_header
      _
    $region3: #{tpu_custom_call.1} parent=1 // loop_header
      %s12 = sphi 0, %s16
      %p13 = scmp.ge.s32.totalorder %s12, 4
      %s22 = sphi 0, %s24
      %s25 = sphi 0, %s22
      %s26 = sphi 0, %s25
      %s42 = sphi 0, %s26
      %s46 = sphi 0, %s46
      %s48 = sphi 0, %s46
      %s49 = sphi 0, %s48
      %s63 = sphi 0, %s49
      %s67 = sphi 0, %s67
      %s69 = sphi 0, %s67
      %s70 = sphi 0, %s69
      %s84 = sphi 0, %s70
      %s90 = sphi 0, %s92
      %s93 = sphi 0, %s90
      %s94 = sphi 0, %s93
      %s110 = sphi 0, %s94
    $region4: #{tpu_custom_call.1} parent=1 // loop_header_branch
      %15 = sbr.rel (%p13) target = $region8
    $region5: #{tpu_custom_call.1} parent=1 // loop_body
      %s17 = ssub.s32 %s12, 1
      %s18 = ssub.s32 %s12, 2
      %s19 = sadd.s32 %s12, 1
      %s20 = ssub.s32 %s12, %s19
      %p21 = scmp.eq.s32.totalorder %s20, 0
      %s23 = sadd.s32 %s22, 1
      %s24 = scalar_select %p21, %s22, %s23
      %p27 = pneg %p21
      %p28 = scmp.eq.s32.totalorder %s12, 1
      %p29 = por %p27, %p28
      %p30 = scmp.ne.s32.totalorder %s22, %s25
      %p31 = scmp.eq.s32.totalorder %s12, 0
      %p32 = por %p30, %p31
      %p33 = scmp.ne.s32.totalorder %s22, %s25
      %p34 = scmp.eq.s32.totalorder %s17, 1
      %p35 = por %p33, %p34
      %p36 = scmp.ne.s32.totalorder %s25, %s26
      %p37 = scmp.eq.s32.totalorder %s17, 0
      %p38 = por %p36, %p37
      %p39 = scmp.ne.s32.totalorder %s25, %s26
      %p40 = scmp.eq.s32.totalorder %s18, 1
      %p41 = por %p39, %p40
      %p43 = scmp.ne.s32.totalorder %s26, %s42
      %p44 = scmp.eq.s32.totalorder %s18, 0
      %p45 = por %p43, %p44
      %s47 = sadd.s32 %s46, 1
      %p50 = scmp.eq.s32.totalorder %s12, 1
      %p51 = scmp.ne.s32.totalorder %s46, %s48
      %p52 = scmp.eq.s32.totalorder %s12, 0
      %p53 = por %p51, %p52
      %p54 = scmp.ne.s32.totalorder %s46, %s48
      %p55 = scmp.eq.s32.totalorder %s17, 1
      %p56 = por %p54, %p55
      %p57 = scmp.ne.s32.totalorder %s48, %s49
      %p58 = scmp.eq.s32.totalorder %s17, 0
      %p59 = por %p57, %p58
      %p60 = scmp.ne.s32.totalorder %s48, %s49
      %p61 = scmp.eq.s32.totalorder %s18, 1
      %p62 = por %p60, %p61
      %p64 = scmp.ne.s32.totalorder %s49, %s63
      %p65 = scmp.eq.s32.totalorder %s18, 0
      %p66 = por %p64, %p65
      %s68 = sadd.s32 %s67, 1
      %p71 = scmp.eq.s32.totalorder %s12, 1
      %p72 = scmp.ne.s32.totalorder %s67, %s69
      %p73 = scmp.eq.s32.totalorder %s12, 0
      %p74 = por %p72, %p73
      %p75 = scmp.ne.s32.totalorder %s67, %s69
      %p76 = scmp.eq.s32.totalorder %s17, 1
      %p77 = por %p75, %p76
      %p78 = scmp.ne.s32.totalorder %s69, %s70
      %p79 = scmp.eq.s32.totalorder %s17, 0
      %p80 = por %p78, %p79
      %p81 = scmp.ne.s32.totalorder %s69, %s70
      %p82 = scmp.eq.s32.totalorder %s18, 1
      %p83 = por %p81, %p82
      %p85 = scmp.ne.s32.totalorder %s70, %s84
      %p86 = scmp.eq.s32.totalorder %s18, 0
      %p87 = por %p85, %p86
      %s88 = ssub.s32 %s12, %s19
      %p89 = scmp.eq.s32.totalorder %s88, 0
      %s91 = sadd.s32 %s90, 1
      %s92 = scalar_select %p89, %s90, %s91
      %p95 = pneg %p89
      %p96 = scmp.eq.s32.totalorder %s12, 1
      %p97 = por %p95, %p96
      %p98 = scmp.ne.s32.totalorder %s90, %s93
      %p99 = scmp.eq.s32.totalorder %s12, 0
      %p100 = por %p98, %p99
      %p101 = scmp.ne.s32.totalorder %s90, %s93
      %p102 = scmp.eq.s32.totalorder %s17, 1
      %p103 = por %p101, %p102
      %p104 = scmp.ne.s32.totalorder %s93, %s94
      %p105 = scmp.eq.s32.totalorder %s17, 0
      %p106 = por %p104, %p105
      %p107 = scmp.ne.s32.totalorder %s93, %s94
      %p108 = scmp.eq.s32.totalorder %s18, 1
      %p109 = por %p107, %p108
      %p111 = scmp.ne.s32.totalorder %s94, %s110
      %p112 = scmp.eq.s32.totalorder %s18, 0
      %p113 = por %p111, %p112
      %p114 = scmp.le.s32.totalorder 1, %s12
      %p115 = scmp.lt.s32.totalorder %s12, 3
      %p116 = pnand %p114, %p115
      %p117 = pneg %p116
      // Predicated region
      $region9: #{tpu_custom_call.1} parent=5 // pred_check
        _
      $region10: #{tpu_custom_call.1} parent=5 // pred_check_branch
        %119 = sbr.rel (%p116) target = $region12
      $region11: #{tpu_custom_call.1} parent=5 // pred_region
        %s120 = ssub.s32 %s12, 1
        // Predicated region
        $region13: #{tpu_custom_call.1} parent=11 // pred_check
          %p121 = pneg %p59
        $region14: #{tpu_custom_call.1} parent=11 // pred_check_branch
          %123 = sbr.rel (%p121) target = $region16
        $region15: #{tpu_custom_call.1} parent=11 // pred_region
          _
        $region16: #{tpu_custom_call.1} parent=11 // pred_fallthru
          _
        // Predicated region
        $region17: #{tpu_custom_call.1} parent=11 // pred_check
          %p124 = pneg %p80
        $region18: #{tpu_custom_call.1} parent=11 // pred_check_branch
          %126 = sbr.rel (%p124) target = $region20
        $region19: #{tpu_custom_call.1} parent=11 // pred_region
          _
        $region20: #{tpu_custom_call.1} parent=11 // pred_fallthru
          _
      $region12: #{tpu_custom_call.1} parent=5 // pred_fallthru
        _
      %p127 = scmp.lt.s32.totalorder %s12, 2
      // Predicated region
      $region21: #{tpu_custom_call.1} parent=5 // pred_check
        %p128 = pneg %p127
      $region22: #{tpu_custom_call.1} parent=5 // pred_check_branch
        %130 = sbr.rel (%p128) target = $region24
      $region23: #{tpu_custom_call.1} parent=5 // pred_region
        // Predicated region
        $region25: #{tpu_custom_call.1} parent=23 // pred_check
          %p131 = pneg %p32
        $region26: #{tpu_custom_call.1} parent=23 // pred_check_branch
          %133 = sbr.rel (%p131) target = $region28
        $region27: #{tpu_custom_call.1} parent=23 // pred_region
          %s134 = sand.u32 %s22, 1
          %s135 = scalar_lea.sflag [#allocation3], %s134
          %s136 = sand.u32 %s22, 1
          %s137 = smul.addr %s136, 32
          %s138 = scalar_lea.vmem [#allocation2], %s137
          %s140 = ssub.s32 512, 512
          %141 = vsyncadd %s135, %s140
          %s142 = smul.addr %s12, 4
          %s143 = smul.addr %s142, 128
          %s144 = scalar_lea.hbm %s0, %s143
          %s145 = sshll.u32 %s138, 4
          %s146 = int_to_ptr.vmem [resolvable:$true] %s145
          %151 = dma.hbm_to_vmem [thread:$0]  %s144, 512, %s146, %s135, 128, 128, 8
        $region28: #{tpu_custom_call.1} parent=23 // pred_fallthru
          _
      $region24: #{tpu_custom_call.1} parent=5 // pred_fallthru
        _
      %p152 = scmp.le.s32.totalorder 1, %s12
      %p153 = scmp.lt.s32.totalorder %s12, 3
      %p154 = pnand %p152, %p153
      %p155 = pneg %p154
      // Predicated region
      $region29: #{tpu_custom_call.1} parent=5 // pred_check
        _
      $region30: #{tpu_custom_call.1} parent=5 // pred_check_branch
        %157 = sbr.rel (%p154) target = $region32
      $region31: #{tpu_custom_call.1} parent=5 // pred_region
        %s158 = ssub.s32 %s12, 1
        %s159 = sand.u32 %s25, 1
        %s160 = scalar_lea.sflag [#allocation3], %s159
        %s161 = sand.u32 %s25, 1
        %s162 = smul.addr %s161, 32
        %s163 = scalar_lea.vmem [#allocation2], %s162
        // Predicated region
        $region33: #{tpu_custom_call.1} parent=31 // pred_check
          %p164 = pneg %p38
        $region34: #{tpu_custom_call.1} parent=31 // pred_check_branch
          %166 = sbr.rel (%p164) target = $region36
        $region35: #{tpu_custom_call.1} parent=31 // pred_region
          %167 = dma.done %s160, 512
        $region36: #{tpu_custom_call.1} parent=31 // pred_fallthru
          _
        %s168 = sand.u32 %s25, 1
        %s169 = scalar_lea.sflag [#allocation3], %s168
        %s170 = sand.u32 %s25, 1
        %s171 = smul.addr %s170, 32
        %s172 = scalar_lea.vmem [#allocation2], %s171
        %p173 = pneg %p38
        %p174 = pneg %p35
        %p175 = pneg %p59
        %p176 = pneg %p56
        %p177 = pneg %p80
        %p178 = pneg %p77
        %p179 = pneg %p106
        %p180 = pneg %p103
        %p181 = scmp.lt.s32.totalorder %s17, 1
        %s182 = scalar_select %p181, %s17, 1
        %s183 = smul.addr %s182, 2
        %s184 = smul.addr %s183, 8
        %s185 = scalar_lea.vmem %s3, %s184
        %p186 = scmp.lt.s32.totalorder %s17, 1
        %s187 = scalar_select %p186, %s17, 1
        %s188 = smul.addr %s187, 2
        %s189 = smul.addr %s188, 8
        %s190 = scalar_lea.vmem %s3, %s189
        %v191 = vld [vmem:[%s1] sm:$0xff]
        %v192 = vld [vmem:[%s1 + $0x8] sm:$0x3]
        %v193 = vld [vmem:[%s163] sm:$0xff]
        %v194 = vld [vmem:[%s163 + $0x8] sm:$0xff]
        %v195 = vld [vmem:[%s163 + $0x10] sm:$0xff]
        %v196 = vld [vmem:[%s163 + $0x18] sm:$0xff]
        %v197 = vld [vmem:[%s2] sm:$0xff]
        %v198 = vld [vmem:[%s2 + $0x8] sm:$0x3]
        %200 = vset.pattern.permute.xlu0 0
        %201 = vperm.xlu0 %200, %v197
        %v202 = vpop.permute.xlu0 %201
        %205 = vset.pattern.permute.xlu0 0
        %206 = vperm.xlu0 %205, %v198
        %v207 = vpop.permute.xlu0 %206
        %vm209 = vcmask 261120
        %v211 = vsel %vm209, %v191, 0
        %v214 = vsel %vm209, %v192, 0
        %216 = vmatprep.subr.mxu0 0.0
        %217 = vmatpush1.msra.mxu0 0.0
        %218 = vmatprep.subr.mxu0 0.0
        %219 = vmatpush1.msra.mxu0 0.0
        %220 = vmatprep.subr.mxu0 0.0
        %221 = vmatpush1.msra.mxu0 0.0
        %222 = vmatprep.subr.mxu0 0.0
        %223 = vmatpush1.msra.mxu0 0.0
        %224 = vmatprep.subr.mxu0 0.0
        %225 = vmatpush1.msra.mxu0 0.0
        %226 = vmatprep.subr.mxu0 0.0
        %227 = vmatpush1.msra.mxu0 0.0
        %228 = vmatprep.subr.mxu0 0.0
        %229 = vmatpush1.msra.mxu0 0.0
        %230 = vmatprep.subr.mxu0 0.0
        %231 = vmatpush1.msra.mxu0 0.0
        %232 = vmatprep.subr.mxu0 0.0
        %233 = vmatpush1.msra.mxu0 0.0
        %234 = vmatprep.subr.mxu0 0.0
        %235 = vmatpush1.msra.mxu0 0.0
        %236 = vmatprep.subr.mxu0 0.0
        %237 = vmatpush1.msra.mxu0 0.0
        %238 = vmatprep.subr.mxu0 0.0
        %239 = vmatpush1.msra.mxu0 0.0
        %240 = vmatprep.subr.mxu0 0.0
        %241 = vmatpush1.msra.mxu0 %v196
        %242 = vmatprep.subr.mxu0 0.0
        %243 = vmatpush1.msra.mxu0 %v195
        %244 = vmatprep.subr.mxu0 0.0
        %245 = vmatpush1.msra.mxu0 %v194
        %246 = vmatprep.subr.mxu0 0.0
        %247 = vmatpush1.msra.mxu0 %v193
        %248 = vmatprep.subr.mxu0 0.0
        %249 = vmatpush2.msra.mxu0 0.0
        %250 = vmatprep.subr.mxu0 0.0
        %251 = vmatpush2.msra.mxu0 0.0
        %252 = vmatprep.subr.mxu0 0.0
        %253 = vmatpush2.msra.mxu0 0.0
        %254 = vmatprep.subr.mxu0 0.0
        %255 = vmatpush2.msra.mxu0 0.0
        %256 = vmatprep.subr.mxu0 0.0
        %257 = vmatpush2.msra.mxu0 0.0
        %258 = vmatprep.subr.mxu0 0.0
        %259 = vmatpush2.msra.mxu0 0.0
        %260 = vmatprep.subr.mxu0 0.0
        %261 = vmatpush2.msra.mxu0 0.0
        %262 = vmatprep.subr.mxu0 0.0
        %263 = vmatpush2.msra.mxu0 0.0
        %264 = vmatprep.subr.mxu0 0.0
        %265 = vmatpush2.msra.mxu0 0.0
        %266 = vmatprep.subr.mxu0 0.0
        %267 = vmatpush2.msra.mxu0 0.0
        %268 = vmatprep.subr.mxu0 0.0
        %269 = vmatpush2.msra.mxu0 0.0
        %270 = vmatprep.subr.mxu0 0.0
        %271 = vmatpush2.msra.mxu0 0.0
        %272 = vmatprep.subr.mxu0 0.0
        %273 = vmatpush2.msra.mxu0 0.0
        %274 = vmatprep.subr.mxu0 0.0
        %275 = vmatpush2.msra.mxu0 0.0
        %276 = vmatprep.subr.mxu0 0.0
        %277 = vmatpush2.msra.mxu0 0.0
        %278 = vmatprep.subr.mxu0 0.0
        %279 = vmatpush2.msra.mxu0 0.0
        %280 = vmatprep.mubr.f32.mxu0 0.0
        %281 = vmatmul.mubr.f32.gmra.mxu0 %v211
        %v282 = vpop.f32.mrf.mxu0
        %v283 = vadd.f32 %v202, %v282
        %v284 = vpop.f32.mrf.mxu0
        %285 = vmatprep.mubr.f32.mxu0 0.0
        %286 = vmatmul.mubr.f32.gmra.mxu0 %v214
        %v287 = vpop.f32.mrf.mxu0
        %v288 = vadd.f32 %v207, %v287
        %v289 = vpop.f32.mrf.mxu0
        %290 = vdwg.mxu0
        %vm291 = vcmask 523264
        %292 = vst.msk [vmem:[%s190] sm:$0xff] %vm291, %v283
        %vm293 = vcmask 517120
        %294 = vst.msk [vmem:[%s190 + $0x8] sm:$0x3] %vm293, %v288
        %p295 = scmp.lt.s32.totalorder %s17, 1
        %s296 = scalar_select %p295, %s17, 1
        %s297 = smul.addr %s296, 2
        %s298 = smul.addr %s297, 8
        %s299 = scalar_lea.vmem %s3, %s298
        // Predicated region
        $region37: #{tpu_custom_call.1} parent=31 // pred_check
          %p300 = pneg %p103
        $region38: #{tpu_custom_call.1} parent=31 // pred_check_branch
          %302 = sbr.rel (%p300) target = $region40
        $region39: #{tpu_custom_call.1} parent=31 // pred_region
          _
        $region40: #{tpu_custom_call.1} parent=31 // pred_fallthru
          _
      $region32: #{tpu_custom_call.1} parent=5 // pred_fallthru
        _
      %p303 = scmp.le.s32.totalorder 2, %s12
      // Predicated region
      $region41: #{tpu_custom_call.1} parent=5 // pred_check
        %p304 = pneg %p303
      $region42: #{tpu_custom_call.1} parent=5 // pred_check_branch
        %306 = sbr.rel (%p304) target = $region44
      $region43: #{tpu_custom_call.1} parent=5 // pred_region
        %s307 = ssub.s32 %s12, 2
        // Predicated region
        $region45: #{tpu_custom_call.1} parent=43 // pred_check
          %p308 = pneg %p109
        $region46: #{tpu_custom_call.1} parent=43 // pred_check_branch
          %310 = sbr.rel (%p308) target = $region48
        $region47: #{tpu_custom_call.1} parent=43 // pred_region
          %p311 = scmp.lt.s32.totalorder %s18, 1
          %s312 = scalar_select %p311, %s18, 1
          %s313 = smul.addr %s312, 2
          %s314 = smul.addr %s313, 8
          %s315 = scalar_lea.vmem %s3, %s314
        $region48: #{tpu_custom_call.1} parent=43 // pred_fallthru
          _
      $region44: #{tpu_custom_call.1} parent=5 // pred_fallthru
        _
    $region6: #{tpu_custom_call.1} parent=1 // loop_footer
      %s16 = sadd.s32 1, %s12
    $region7: #{tpu_custom_call.1} parent=1 // loop_footer_branch
      %11 = sbr.rel target = $region3
    $region8: #{tpu_custom_call.1} parent=1 // loop_exit
      _
    %316 = vsyncpa [#allocation3], 1
    %s317 = scalar_lea.sflag [#allocation3], 1
    %318 = vsyncpa %s317, 1

</llo_original>
